<compile_context>
chip_gen: v7x
topology: tpu7x:2x2x1
jax: 0.10.0
libtpu: 0.0.40
codegen_flags: <defaults>
</compile_context>

<pallas_src>
import jax
import jax.numpy as jnp
from jax.experimental import pallas as pl
from jax.experimental.pallas import tpu as pltpu

_LOG_2PI = 1.8378770664093453  # log(2*pi)
_LANES = 128
_SUBLANES = 8


def _round_up(x, m):
    return -(-x // m) * m


def _ziln_kernel(rows_ref, mu_ref, sigma_ref, cls_pred_ref, label_ref, out_ref):
    tile_r = mu_ref.shape[0]

    mu = mu_ref[...].astype(jnp.float32)
    sigma = sigma_ref[...].astype(jnp.float32)
    p = cls_pred_ref[...].astype(jnp.float32)
    y = label_ref[...].astype(jnp.float32)

    pos = y > 0

    # BCE with PyTorch's per-term clamp at -100; one log per element.
    sel = jnp.where(pos, p, 1.0 - p)
    bce = -jnp.maximum(jnp.log(sel), -100.0)

    # LogNormal(mu, sigma).log_prob(x)
    #   = -(log x - mu)^2 / (2 sigma^2) - log x - log sigma - 0.5 log(2 pi)
    ln_label = jnp.where(pos, y, 1.0)
    logx = jnp.log(ln_label)
    inv_sigma = pl.reciprocal(sigma, approx=True)   # EUP slot, no Newton step
    z = (logx - mu) * inv_sigma
    log_prob = -0.5 * z * z - logx - jnp.log(sigma) - 0.5 * _LOG_2PI

    contrib = bce - log_prob

    def reduce_to_slab(x):
        # (tile_r,128) -> (8,128): sublane groups line up with f32 vregs, so
        # this is pure per-vreg VALU adds (no in-kernel cross-lane reduce).
        return jnp.sum(x.reshape(tile_r // _SUBLANES, _SUBLANES, _LANES), axis=0)

    i = pl.program_id(0)
    last = pl.num_programs(0) - 1

    @pl.when(i != last)
    def _():
        out_ref[...] = reduce_to_slab(contrib)

    # Only the last grid step can hold a ragged block (rows % tile_r != 0);
    # mask its out-of-bounds (garbage-padded) rows there and nowhere else.
    @pl.when(i == last)
    def _():
        row = i * tile_r + jax.lax.broadcasted_iota(
            jnp.int32, (tile_r, _LANES), 0)
        out_ref[...] = reduce_to_slab(
            jnp.where(row < rows_ref[0], contrib, 0.0))


def _ziln_sum_jax(mu, sigma, cls_pred, label):
    """Plain-JAX ZILN contribution sum (used for the tiny ragged tail)."""
    mu, sigma, cls_pred, label = (x.astype(jnp.float32)
                                  for x in (mu, sigma, cls_pred, label))
    pos = label > 0
    sel = jnp.where(pos, cls_pred, 1.0 - cls_pred)
    bce = -jnp.maximum(jnp.log(sel), -100.0)
    ln_label = jnp.where(pos, label, 1.0)
    logx = jnp.log(ln_label)
    z = (logx - mu) / sigma
    log_prob = -0.5 * z * z - logx - jnp.log(sigma) - 0.5 * _LOG_2PI
    return jnp.sum(bce - log_prob)


def ziln_loss_pallas(mu, sigma, cls_pred, label, *, tile_rows=2048):
    """ZILN loss over flat inputs of identical shape (B,). Any B >= 1."""
    B = mu.shape[0]
    itemsizes = [jnp.dtype(x.dtype).itemsize for x in (mu, sigma, cls_pred, label)]
    # Sub-32-bit inputs need taller minimum tiles (packed (16,128)/(32,128)).
    sub_mult = _SUBLANES * max(1, 4 // int(min(itemsizes)))
    granule = sub_mult * _LANES

    main = (B // granule) * granule          # kernel handles the aligned prefix
    total = jnp.float32(0.0)

    if main:
        rows = main // _LANES                # multiple of sub_mult
        # Aim for >= 4 grid steps (keeps both v7x TCs busy and the DMA pipeline
        # primed); never below one packed tile nor above tile_rows nor rows.
        tile_r = max(sub_mult, _round_up(-(-rows // 4), sub_mult))
        tile_r = min(tile_r, _round_up(tile_rows, sub_mult), rows)
        num_tiles = -(-rows // tile_r)

        def as_rows(x):
            if main != B:
                x = x[:main]                 # aligned prefix; no padded copy
            return jnp.reshape(x, (rows, _LANES))   # free bitcast

        in_spec = pl.BlockSpec((tile_r, _LANES), lambda i, rows_smem: (i, 0))
        in_bytes = sum(sz * main for sz in itemsizes)

        partials = pl.pallas_call(
            _ziln_kernel,
            out_shape=jax.ShapeDtypeStruct(
                (num_tiles * _SUBLANES, _LANES), jnp.float32),
            grid_spec=pltpu.PrefetchScalarGridSpec(
                num_scalar_prefetch=1,       # valid-row count lives in SMEM
                grid=(num_tiles,),
                in_specs=[in_spec, in_spec, in_spec, in_spec],
                out_specs=pl.BlockSpec((_SUBLANES, _LANES),
                                       lambda i, rows_smem: (i, 0)),
            ),
            compiler_params=pltpu.CompilerParams(
                dimension_semantics=("parallel",)),
            cost_estimate=pl.CostEstimate(
                flops=12 * main,
                transcendentals=4 * main,
                bytes_accessed=in_bytes + num_tiles * _SUBLANES * _LANES * 4),
        )(jnp.array([rows], jnp.int32),
          as_rows(mu), as_rows(sigma), as_rows(cls_pred), as_rows(label))
        total = total + jnp.sum(partials)

    if main < B:
        # Ragged tail (< sub_mult*128 elements): tiny plain-JAX expression.
        total = total + _ziln_sum_jax(mu[main:], sigma[main:],
                                      cls_pred[main:], label[main:])

    return total / jnp.float32(B)


def ziln_loss_ref(mu, sigma, cls_pred, label):
    """Plain-JAX reference with identical semantics (for sanity check)."""
    mu, sigma, cls_pred, label = (x.astype(jnp.float32)
                                  for x in (mu, sigma, cls_pred, label))
    cls_label = jnp.where(label > 0, 1.0, 0.0)
    ln_label = cls_label * label + (1.0 - cls_label)
    log_p = jnp.maximum(jnp.log(cls_pred), -100.0)
    log_1mp = jnp.maximum(jnp.log(1.0 - cls_pred), -100.0)
    ce = jnp.mean(-(cls_label * log_p + (1.0 - cls_label) * log_1mp))
    logx = jnp.log(ln_label)
    log_prob = (-0.5 * (logx - mu) ** 2 / (sigma * sigma)
                - logx - jnp.log(sigma) - 0.5 * _LOG_2PI)
    return -jnp.mean(log_prob) + ce


def _make_inputs(key, B):
    k1, k2, k3, k4, k5 = jax.random.split(key, 5)
    mu = jax.random.normal(k1, (B,), dtype=jnp.float32)
    sigma = jax.nn.softplus(jax.random.normal(k2, (B,), dtype=jnp.float32)) + 0.5
    cls_pred = jax.nn.sigmoid(jax.random.normal(k3, (B,), dtype=jnp.float32))
    mask = (jax.random.uniform(k4, (B,)) > 0.5).astype(jnp.float32)
    label = mask * jnp.exp(jax.random.normal(k5, (B,), dtype=jnp.float32))
    return mu, sigma, cls_pred, label


if __name__ == "__main__":
    key = jax.random.PRNGKey(0)
    keys = jax.random.split(key, 3)
    # 2048: aligned (zero-copy reshape), 2 grid steps, no tail.
    # 5300: multi-tile with ragged last block (row mask) + 180-element JAX tail.
    #   96: below one (8,128) granule -> pure-JAX tail path (kernel not needed).
    for k, B in zip(keys, (2048, 5300, 96)):
        mu, sigma, cls_pred, label = _make_inputs(k, B)
        loss = jax.block_until_ready(ziln_loss_pallas(mu, sigma, cls_pred, label))
        ref = ziln_loss_ref(mu, sigma, cls_pred, label)
        assert jnp.allclose(loss, ref, rtol=1e-3, atol=1e-3), (B, float(loss), float(ref))

    print("KERNEL_OK")
</pallas_src>

<mosaic_0001>
module attributes {stable_mosaic.version = 11 : i64} {
  func.func @_ziln_kernel(%arg0: i32, %arg1: memref<1xi32, #tpu.memory_space<smem>>, %arg2: memref<8x128xf32, #tpu.memory_space<vmem>>, %arg3: memref<8x128xf32, #tpu.memory_space<vmem>>, %arg4: memref<8x128xf32, #tpu.memory_space<vmem>>, %arg5: memref<8x128xf32, #tpu.memory_space<vmem>>, %arg6: memref<8x128xf32, #tpu.memory_space<vmem>>) attributes {dimension_semantics = [#tpu.dimension_semantics<parallel>], iteration_bounds = array<i64: 2>, scalar_prefetch = 1 : i64, scratch_operands = 0 : i64, tpu.core_type = #tpu.core_type<tc>, window_params = [{transform_indices = @transform_0, window_bounds = array<i64: 8, 128>}, {transform_indices = @transform_1, window_bounds = array<i64: 8, 128>}, {transform_indices = @transform_2, window_bounds = array<i64: 8, 128>}, {transform_indices = @transform_3, window_bounds = array<i64: 8, 128>}, {transform_indices = @transform_4, window_bounds = array<i64: 8, 128>}]} {
    %c0 = arith.constant 0 : index
    %c0_0 = arith.constant 0 : index
    %0 = vector.load %arg2[%c0, %c0_0] : memref<8x128xf32, #tpu.memory_space<vmem>>, vector<8x128xf32>
    %c0_1 = arith.constant 0 : index
    %c0_2 = arith.constant 0 : index
    %1 = vector.load %arg3[%c0_1, %c0_2] : memref<8x128xf32, #tpu.memory_space<vmem>>, vector<8x128xf32>
    %c0_3 = arith.constant 0 : index
    %c0_4 = arith.constant 0 : index
    %2 = vector.load %arg4[%c0_3, %c0_4] : memref<8x128xf32, #tpu.memory_space<vmem>>, vector<8x128xf32>
    %c0_5 = arith.constant 0 : index
    %c0_6 = arith.constant 0 : index
    %3 = vector.load %arg5[%c0_5, %c0_6] : memref<8x128xf32, #tpu.memory_space<vmem>>, vector<8x128xf32>
    %cst = arith.constant 0.000000e+00 : f32
    %4 = vector.broadcast %cst : f32 to vector<8x128xf32>
    %5 = arith.cmpf ogt, %3, %4 : vector<8x128xf32>
    %cst_7 = arith.constant 1.000000e+00 : f32
    %6 = vector.broadcast %cst_7 : f32 to vector<8x128xf32>
    %7 = arith.subf %6, %2 : vector<8x128xf32>
    %8 = arith.select %5, %2, %7 : vector<8x128xi1>, vector<8x128xf32>
    %9 = math.log %8 : vector<8x128xf32>
    %cst_8 = arith.constant -1.000000e+02 : f32
    %10 = vector.broadcast %cst_8 : f32 to vector<8x128xf32>
    %11 = arith.maximumf %9, %10 : vector<8x128xf32>
    %cst_9 = arith.constant 0.000000e+00 : f32
    %12 = vector.broadcast %cst_9 : f32 to vector<8x128xf32>
    %13 = arith.subf %12, %11 : vector<8x128xf32>
    %cst_10 = arith.constant 1.000000e+00 : f32
    %14 = vector.broadcast %cst_10 : f32 to vector<8x128xf32>
    %15 = arith.select %5, %3, %14 : vector<8x128xi1>, vector<8x128xf32>
    %16 = math.log %15 : vector<8x128xf32>
    %17 = tpu.reciprocal %1 {approx = true} : vector<8x128xf32> -> vector<8x128xf32>
    %18 = arith.subf %16, %0 : vector<8x128xf32>
    %19 = arith.mulf %18, %17 : vector<8x128xf32>
    %cst_11 = arith.constant -5.000000e-01 : f32
    %20 = vector.broadcast %cst_11 : f32 to vector<8x128xf32>
    %21 = arith.mulf %20, %19 : vector<8x128xf32>
    %22 = arith.mulf %21, %19 : vector<8x128xf32>
    %23 = arith.subf %22, %16 : vector<8x128xf32>
    %24 = math.log %1 : vector<8x128xf32>
    %25 = arith.subf %23, %24 : vector<8x128xf32>
    %cst_12 = arith.constant 0.918938517 : f32
    %26 = vector.broadcast %cst_12 : f32 to vector<8x128xf32>
    %27 = arith.subf %25, %26 : vector<8x128xf32>
    %28 = arith.subf %13, %27 : vector<8x128xf32>
    %c1_i32 = arith.constant 1 : i32
    %29 = arith.cmpi ne, %arg0, %c1_i32 : i32
    %30 = arith.extui %29 : i1 to i32
    %c0_i32 = arith.constant 0 : i32
    %31 = arith.cmpi ne, %30, %c0_i32 : i32
    scf.if %31 {
      %35 = vector.shape_cast %28 : vector<8x128xf32> to vector<1x8x128xf32>
      %cst_15 = arith.constant dense<0.000000e+00> : vector<8x128xf32>
      %36 = vector.multi_reduction <add>, %35, %cst_15 [0] : vector<1x8x128xf32> to vector<8x128xf32>
      %c0_16 = arith.constant 0 : index
      %c0_17 = arith.constant 0 : index
      %37 = vector.load %arg6[%c0_16, %c0_17] : memref<8x128xf32, #tpu.memory_space<vmem>>, vector<8x128xf32>
      tpu.vector_store %arg6[%c0_16, %c0_17], %36 {strides = array<i32>} : memref<8x128xf32, #tpu.memory_space<vmem>>, vector<8x128xf32>,
    } else {
    }
    %c1_i32_13 = arith.constant 1 : i32
    %32 = arith.cmpi eq, %arg0, %c1_i32_13 : i32
    %33 = arith.extui %32 : i1 to i32
    %c0_i32_14 = arith.constant 0 : i32
    %34 = arith.cmpi ne, %33, %c0_i32_14 : i32
    scf.if %34 {
      %c8_i32 = arith.constant 8 : i32
      %35 = arith.muli %arg0, %c8_i32 : i32
      %36 = tpu.iota {dimensions = array<i32: 0>} : vector<8x128xi32>
      %37 = vector.broadcast %35 : i32 to vector<8x128xi32>
      %38 = arith.addi %37, %36 : vector<8x128xi32>
      %c0_15 = arith.constant 0 : index
      %39 = memref.load %arg1[%c0_15] : memref<1xi32, #tpu.memory_space<smem>>
      %40 = vector.broadcast %39 : i32 to vector<8x128xi32>
      %41 = arith.cmpi slt, %38, %40 : vector<8x128xi32>
      %cst_16 = arith.constant 0.000000e+00 : f32
      %42 = vector.broadcast %cst_16 : f32 to vector<8x128xf32>
      %43 = arith.select %41, %28, %42 : vector<8x128xi1>, vector<8x128xf32>
      %44 = vector.shape_cast %43 : vector<8x128xf32> to vector<1x8x128xf32>
      %cst_17 = arith.constant dense<0.000000e+00> : vector<8x128xf32>
      %45 = vector.multi_reduction <add>, %44, %cst_17 [0] : vector<1x8x128xf32> to vector<8x128xf32>
      %c0_18 = arith.constant 0 : index
      %c0_19 = arith.constant 0 : index
      %46 = vector.load %arg6[%c0_18, %c0_19] : memref<8x128xf32, #tpu.memory_space<vmem>>, vector<8x128xf32>
      tpu.vector_store %arg6[%c0_18, %c0_19], %45 {strides = array<i32>} : memref<8x128xf32, #tpu.memory_space<vmem>>, vector<8x128xf32>,
    } else {
    }
    return
  }
  func.func @transform_0(%arg0: i32, %arg1: memref<1xi32, #tpu.memory_space<smem>>) -> (i32, i32) {
    %c0_i32 = arith.constant 0 : i32
    %c0_i32_0 = arith.constant 0 : i32
    return %arg0, %c0_i32 : i32, i32
  }
  func.func @transform_1(%arg0: i32, %arg1: memref<1xi32, #tpu.memory_space<smem>>) -> (i32, i32) {
    %c0_i32 = arith.constant 0 : i32
    %c0_i32_0 = arith.constant 0 : i32
    return %arg0, %c0_i32 : i32, i32
  }
  func.func @transform_2(%arg0: i32, %arg1: memref<1xi32, #tpu.memory_space<smem>>) -> (i32, i32) {
    %c0_i32 = arith.constant 0 : i32
    %c0_i32_0 = arith.constant 0 : i32
    return %arg0, %c0_i32 : i32, i32
  }
  func.func @transform_3(%arg0: i32, %arg1: memref<1xi32, #tpu.memory_space<smem>>) -> (i32, i32) {
    %c0_i32 = arith.constant 0 : i32
    %c0_i32_0 = arith.constant 0 : i32
    return %arg0, %c0_i32 : i32, i32
  }
  func.func @transform_4(%arg0: i32, %arg1: memref<1xi32, #tpu.memory_space<smem>>) -> (i32, i32) {
    %c0_i32 = arith.constant 0 : i32
    %c0_i32_0 = arith.constant 0 : i32
    return %arg0, %c0_i32 : i32, i32
  }
}

</mosaic_0001>

<llo_original>
// kernel: tpu_custom_call.1
$region0: #{tpu_custom_call.1}
  #allocation0 [shape = 'u32[]', space=smem, size = 0x4, offset = 0x4, fixed_abs, tag = 'smem constant byte address 0x4 - core index']
  #allocation1 [shape = 'u32[144,128]{1,0:T(1,128)}', space=vmem, size = 0x12000, scoped, tag = 'internal scratch']
  #allocation2 [shape = 's32[1]{0}', space=sflag, size = 0x4, scoped, tag = 'scoped memory for tpu_custom_call.1']
  #allocation3 [shape = 's32[1]{0:T(128)S(6)}', space=smem, size = 0x200, scoped, tag = 'prefetched SMEM operand 0']
  %s0 = inlined_call_operand.<no memory space> [shape: s32[1], index: 0, kind: input, shape index: {}]
  %s1 = inlined_call_operand.hbm [shape: f32[16,128], index: 1, kind: input, shape index: {}]
  %s2 = inlined_call_operand.hbm [shape: f32[16,128], index: 2, kind: input, shape index: {}]
  %s3 = inlined_call_operand.hbm [shape: f32[16,128], index: 3, kind: input, shape index: {}]
  %s4 = inlined_call_operand.hbm [shape: f32[16,128], index: 4, kind: input, shape index: {}]
  %s5 = inlined_call_operand.hbm [shape: f32[16,128], index: 5, kind: output, shape index: {}]
  %s6 = sld [smem:[#allocation0]]
  $region73: #{tpu_custom_call.1} parent=0
    _
  %s8 = ssub.s32 1, %s6
  %s9 = scalar_select 0, %s8, %s6
  %10 = sst [smem:[#allocation3]] %s0
  $region1: #{tpu_custom_call.1} parent=0
    #allocation4 [shape = 'u8[8192]{0}', space=vmem, size = 0x2000, scoped, tag = 'input window, operand 1']
    #allocation5 [shape = 's32[2]{0}', space=sflag, size = 0x8, scoped, tag = 'scoped memory for tpu_custom_call.1']
    #allocation6 [shape = 's32[2]{0}', space=sflag, size = 0x8, scoped, tag = 'scoped memory for tpu_custom_call.1']
    #allocation7 [shape = 'u8[8192]{0}', space=vmem, size = 0x2000, scoped, tag = 'input window, operand 2']
    #allocation8 [shape = 's32[2]{0}', space=sflag, size = 0x8, scoped, tag = 'scoped memory for tpu_custom_call.1']
    #allocation9 [shape = 'u8[8192]{0}', space=vmem, size = 0x2000, scoped, tag = 'input window, operand 3']
    #allocation10 [shape = 'u8[8192]{0}', space=vmem, size = 0x2000, scoped, tag = 'input window, operand 4']
    #allocation11 [shape = 's32[2]{0}', space=sflag, size = 0x8, scoped, tag = 'scoped memory for tpu_custom_call.1']
    #allocation12 [shape = 'u8[8192]{0}', space=vmem, size = 0x2000, scoped, tag = 'output window, operand 0']
    %11 = vsyncpa [#allocation5], 0
    %s12 = scalar_lea.sflag [#allocation5], 1
    %13 = vsyncpa %s12, 0
    %14 = vsyncpa [#allocation8], 0
    %s15 = scalar_lea.sflag [#allocation8], 1
    %16 = vsyncpa %s15, 0
    %17 = vsyncpa [#allocation11], 0
    %s18 = scalar_lea.sflag [#allocation11], 1
    %19 = vsyncpa %s18, 0
    %20 = vsyncpa [#allocation6], 0
    %s21 = scalar_lea.sflag [#allocation6], 1
    %22 = vsyncpa %s21, 0
    loop: start=0, step=1, limit=4
    $region2: #{tpu_custom_call.1} parent=1 // loop_pre_header
      _
    $region3: #{tpu_custom_call.1} parent=1 // loop_header
      %s24 = sphi 0, %s28
      %p25 = scmp.ge.s32.totalorder %s24, 4
      %s34 = sphi 0, %s36
      %s37 = sphi 0, %s34
      %s38 = sphi 0, %s37
      %s54 = sphi 0, %s38
      %s60 = sphi 0, %s62
      %s63 = sphi 0, %s60
      %s64 = sphi 0, %s63
      %s80 = sphi 0, %s64
      %s86 = sphi 0, %s88
      %s89 = sphi 0, %s86
      %s90 = sphi 0, %s89
      %s106 = sphi 0, %s90
      %s112 = sphi 0, %s114
      %s115 = sphi 0, %s112
      %s116 = sphi 0, %s115
      %s132 = sphi 0, %s116
      %s138 = sphi 0, %s140
      %s141 = sphi 0, %s138
      %s142 = sphi 0, %s141
      %s158 = sphi 0, %s142
    $region4: #{tpu_custom_call.1} parent=1 // loop_header_branch
      %27 = sbr.rel (%p25) target = $region8
    $region5: #{tpu_custom_call.1} parent=1 // loop_body
      %s29 = ssub.s32 %s24, 1
      %s30 = ssub.s32 %s24, 2
      %s31 = sadd.s32 %s24, 1
      %s32 = ssub.s32 %s24, %s31
      %p33 = scmp.eq.s32.totalorder %s32, 0
      %s35 = sadd.s32 %s34, 1
      %s36 = scalar_select %p33, %s34, %s35
      %p39 = pneg %p33
      %p40 = scmp.eq.s32.totalorder %s24, 1
      %p41 = por %p39, %p40
      %p42 = scmp.ne.s32.totalorder %s34, %s37
      %p43 = scmp.eq.s32.totalorder %s24, 0
      %p44 = por %p42, %p43
      %p45 = scmp.ne.s32.totalorder %s34, %s37
      %p46 = scmp.eq.s32.totalorder %s29, 1
      %p47 = por %p45, %p46
      %p48 = scmp.ne.s32.totalorder %s37, %s38
      %p49 = scmp.eq.s32.totalorder %s29, 0
      %p50 = por %p48, %p49
      %p51 = scmp.ne.s32.totalorder %s37, %s38
      %p52 = scmp.eq.s32.totalorder %s30, 1
      %p53 = por %p51, %p52
      %p55 = scmp.ne.s32.totalorder %s38, %s54
      %p56 = scmp.eq.s32.totalorder %s30, 0
      %p57 = por %p55, %p56
      %s58 = ssub.s32 %s24, %s31
      %p59 = scmp.eq.s32.totalorder %s58, 0
      %s61 = sadd.s32 %s60, 1
      %s62 = scalar_select %p59, %s60, %s61
      %p65 = pneg %p59
      %p66 = scmp.eq.s32.totalorder %s24, 1
      %p67 = por %p65, %p66
      %p68 = scmp.ne.s32.totalorder %s60, %s63
      %p69 = scmp.eq.s32.totalorder %s24, 0
      %p70 = por %p68, %p69
      %p71 = scmp.ne.s32.totalorder %s60, %s63
      %p72 = scmp.eq.s32.totalorder %s29, 1
      %p73 = por %p71, %p72
      %p74 = scmp.ne.s32.totalorder %s63, %s64
      %p75 = scmp.eq.s32.totalorder %s29, 0
      %p76 = por %p74, %p75
      %p77 = scmp.ne.s32.totalorder %s63, %s64
      %p78 = scmp.eq.s32.totalorder %s30, 1
      %p79 = por %p77, %p78
      %p81 = scmp.ne.s32.totalorder %s64, %s80
      %p82 = scmp.eq.s32.totalorder %s30, 0
      %p83 = por %p81, %p82
      %s84 = ssub.s32 %s24, %s31
      %p85 = scmp.eq.s32.totalorder %s84, 0
      %s87 = sadd.s32 %s86, 1
      %s88 = scalar_select %p85, %s86, %s87
      %p91 = pneg %p85
      %p92 = scmp.eq.s32.totalorder %s24, 1
      %p93 = por %p91, %p92
      %p94 = scmp.ne.s32.totalorder %s86, %s89
      %p95 = scmp.eq.s32.totalorder %s24, 0
      %p96 = por %p94, %p95
      %p97 = scmp.ne.s32.totalorder %s86, %s89
      %p98 = scmp.eq.s32.totalorder %s29, 1
      %p99 = por %p97, %p98
      %p100 = scmp.ne.s32.totalorder %s89, %s90
      %p101 = scmp.eq.s32.totalorder %s29, 0
      %p102 = por %p100, %p101
      %p103 = scmp.ne.s32.totalorder %s89, %s90
      %p104 = scmp.eq.s32.totalorder %s30, 1
      %p105 = por %p103, %p104
      %p107 = scmp.ne.s32.totalorder %s90, %s106
      %p108 = scmp.eq.s32.totalorder %s30, 0
      %p109 = por %p107, %p108
      %s110 = ssub.s32 %s24, %s31
      %p111 = scmp.eq.s32.totalorder %s110, 0
      %s113 = sadd.s32 %s112, 1
      %s114 = scalar_select %p111, %s112, %s113
      %p117 = pneg %p111
      %p118 = scmp.eq.s32.totalorder %s24, 1
      %p119 = por %p117, %p118
      %p120 = scmp.ne.s32.totalorder %s112, %s115
      %p121 = scmp.eq.s32.totalorder %s24, 0
      %p122 = por %p120, %p121
      %p123 = scmp.ne.s32.totalorder %s112, %s115
      %p124 = scmp.eq.s32.totalorder %s29, 1
      %p125 = por %p123, %p124
      %p126 = scmp.ne.s32.totalorder %s115, %s116
      %p127 = scmp.eq.s32.totalorder %s29, 0
      %p128 = por %p126, %p127
      %p129 = scmp.ne.s32.totalorder %s115, %s116
      %p130 = scmp.eq.s32.totalorder %s30, 1
      %p131 = por %p129, %p130
      %p133 = scmp.ne.s32.totalorder %s116, %s132
      %p134 = scmp.eq.s32.totalorder %s30, 0
      %p135 = por %p133, %p134
      %s136 = ssub.s32 %s24, %s31
      %p137 = scmp.eq.s32.totalorder %s136, 0
      %s139 = sadd.s32 %s138, 1
      %s140 = scalar_select %p137, %s138, %s139
      %p143 = pneg %p137
      %p144 = scmp.eq.s32.totalorder %s24, 1
      %p145 = por %p143, %p144
      %p146 = scmp.ne.s32.totalorder %s138, %s141
      %p147 = scmp.eq.s32.totalorder %s24, 0
      %p148 = por %p146, %p147
      %p149 = scmp.ne.s32.totalorder %s138, %s141
      %p150 = scmp.eq.s32.totalorder %s29, 1
      %p151 = por %p149, %p150
      %p152 = scmp.ne.s32.totalorder %s141, %s142
      %p153 = scmp.eq.s32.totalorder %s29, 0
      %p154 = por %p152, %p153
      %p155 = scmp.ne.s32.totalorder %s141, %s142
      %p156 = scmp.eq.s32.totalorder %s30, 1
      %p157 = por %p155, %p156
      %p159 = scmp.ne.s32.totalorder %s142, %s158
      %p160 = scmp.eq.s32.totalorder %s30, 0
      %p161 = por %p159, %p160
      %p162 = scmp.le.s32.totalorder 1, %s24
      %p163 = scmp.lt.s32.totalorder %s24, 3
      %p164 = pnand %p162, %p163
      %p165 = pneg %p164
      // Predicated region
      $region9: #{tpu_custom_call.1} parent=5 // pred_check
        _
      $region10: #{tpu_custom_call.1} parent=5 // pred_check_branch
        %167 = sbr.rel (%p164) target = $region12
      $region11: #{tpu_custom_call.1} parent=5 // pred_region
        %s168 = ssub.s32 %s24, 1
      $region12: #{tpu_custom_call.1} parent=5 // pred_fallthru
        _
      %p169 = scmp.lt.s32.totalorder %s24, 2
      // Predicated region
      $region13: #{tpu_custom_call.1} parent=5 // pred_check
        %p170 = pneg %p169
      $region14: #{tpu_custom_call.1} parent=5 // pred_check_branch
        %172 = sbr.rel (%p170) target = $region16
      $region15: #{tpu_custom_call.1} parent=5 // pred_region
        // Predicated region
        $region17: #{tpu_custom_call.1} parent=15 // pred_check
          %p173 = pneg %p44
        $region18: #{tpu_custom_call.1} parent=15 // pred_check_branch
          %175 = sbr.rel (%p173) target = $region20
        $region19: #{tpu_custom_call.1} parent=15 // pred_region
          %s176 = sand.u32 %s34, 1
          %s177 = scalar_lea.sflag [#allocation5], %s176
          %s178 = sand.u32 %s34, 1
          %s179 = smul.addr %s178, 8
          %s180 = scalar_lea.vmem [#allocation4], %s179
          %s182 = ssub.s32 128, 128
          %183 = vsyncadd %s177, %s182
          %s184 = smul.addr %s24, 128
          %s185 = scalar_lea.hbm %s1, %s184
          %s187 = sshll.u32 %s180, 4
          %s188 = int_to_ptr.vmem [resolvable:$true] %s187
          %190 = dma.hbm_to_vmem [thread:$0]  %s185, 128, %s188, %s177
        $region20: #{tpu_custom_call.1} parent=15 // pred_fallthru
          _
        // Predicated region
        $region21: #{tpu_custom_call.1} parent=15 // pred_check
          %p191 = pneg %p70
        $region22: #{tpu_custom_call.1} parent=15 // pred_check_branch
          %193 = sbr.rel (%p191) target = $region24
        $region23: #{tpu_custom_call.1} parent=15 // pred_region
          %s194 = sand.u32 %s24, 1
          %s195 = scalar_lea.sflag [#allocation8], %s194
          %s196 = sand.u32 %s60, 1
          %s197 = smul.addr %s196, 8
          %s198 = scalar_lea.vmem [#allocation7], %s197
          %s200 = ssub.s32 128, 128
          %201 = vsyncadd %s195, %s200
          %s202 = smul.addr %s24, 128
          %s203 = scalar_lea.hbm %s2, %s202
          %s205 = sshll.u32 %s198, 4
          %s206 = int_to_ptr.vmem [resolvable:$true] %s205
          %208 = dma.hbm_to_vmem [thread:$0]  %s203, 128, %s206, %s195
        $region24: #{tpu_custom_call.1} parent=15 // pred_fallthru
          _
        // Predicated region
        $region25: #{tpu_custom_call.1} parent=15 // pred_check
          %p209 = pneg %p96
        $region26: #{tpu_custom_call.1} parent=15 // pred_check_branch
          %211 = sbr.rel (%p209) target = $region28
        $region27: #{tpu_custom_call.1} parent=15 // pred_region
          %s212 = sand.u32 %s24, 1
          %s213 = scalar_lea.sflag [#allocation8], %s212
          %s214 = sand.u32 %s86, 1
          %s215 = smul.addr %s214, 8
          %s216 = scalar_lea.vmem [#allocation9], %s215
          %s218 = ssub.s32 128, 128
          %219 = vsyncadd %s213, %s218
          %s220 = smul.addr %s24, 128
          %s221 = scalar_lea.hbm %s3, %s220
          %s223 = sshll.u32 %s216, 4
          %s224 = int_to_ptr.vmem [resolvable:$true] %s223
          %226 = dma.hbm_to_vmem [thread:$0]  %s221, 128, %s224, %s213
        $region28: #{tpu_custom_call.1} parent=15 // pred_fallthru
          _
        // Predicated region
        $region29: #{tpu_custom_call.1} parent=15 // pred_check
          %p227 = pneg %p122
        $region30: #{tpu_custom_call.1} parent=15 // pred_check_branch
          %229 = sbr.rel (%p227) target = $region32
        $region31: #{tpu_custom_call.1} parent=15 // pred_region
          %s230 = sand.u32 %s112, 1
          %s231 = scalar_lea.sflag [#allocation11], %s230
          %s232 = sand.u32 %s112, 1
          %s233 = smul.addr %s232, 8
          %s234 = scalar_lea.vmem [#allocation10], %s233
          %s236 = ssub.s32 128, 128
          %237 = vsyncadd %s231, %s236
          %s238 = smul.addr %s24, 128
          %s239 = scalar_lea.hbm %s4, %s238
          %s241 = sshll.u32 %s234, 4
          %s242 = int_to_ptr.vmem [resolvable:$true] %s241
          %244 = dma.hbm_to_vmem [thread:$0]  %s239, 128, %s242, %s231
        $region32: #{tpu_custom_call.1} parent=15 // pred_fallthru
          _
      $region16: #{tpu_custom_call.1} parent=5 // pred_fallthru
        _
      %p245 = scmp.le.s32.totalorder 1, %s24
      %p246 = scmp.lt.s32.totalorder %s24, 3
      %p247 = pnand %p245, %p246
      %p248 = pneg %p247
      // Predicated region
      $region33: #{tpu_custom_call.1} parent=5 // pred_check
        _
      $region34: #{tpu_custom_call.1} parent=5 // pred_check_branch
        %250 = sbr.rel (%p247) target = $region36
      $region35: #{tpu_custom_call.1} parent=5 // pred_region
        %s251 = ssub.s32 %s24, 1
        %s252 = sand.u32 %s37, 1
        %s253 = scalar_lea.sflag [#allocation5], %s252
        %s254 = sand.u32 %s37, 1
        %s255 = smul.addr %s254, 8
        %s256 = scalar_lea.vmem [#allocation4], %s255
        // Predicated region
        $region37: #{tpu_custom_call.1} parent=35 // pred_check
          %p257 = pneg %p50
        $region38: #{tpu_custom_call.1} parent=35 // pred_check_branch
          %259 = sbr.rel (%p257) target = $region40
        $region39: #{tpu_custom_call.1} parent=35 // pred_region
          %260 = dma.done %s253, 128
        $region40: #{tpu_custom_call.1} parent=35 // pred_fallthru
          _
        %s261 = sand.u32 %s29, 1
        %s262 = scalar_lea.sflag [#allocation8], %s261
        %s263 = sand.u32 %s63, 1
        %s264 = smul.addr %s263, 8
        %s265 = scalar_lea.vmem [#allocation7], %s264
        // Predicated region
        $region41: #{tpu_custom_call.1} parent=35 // pred_check
          %p266 = pneg %p76
        $region42: #{tpu_custom_call.1} parent=35 // pred_check_branch
          %268 = sbr.rel (%p266) target = $region44
        $region43: #{tpu_custom_call.1} parent=35 // pred_region
          %269 = dma.done %s262, 128
        $region44: #{tpu_custom_call.1} parent=35 // pred_fallthru
          _
        %s270 = sand.u32 %s29, 1
        %s271 = scalar_lea.sflag [#allocation8], %s270
        %s272 = sand.u32 %s89, 1
        %s273 = smul.addr %s272, 8
        %s274 = scalar_lea.vmem [#allocation9], %s273
        // Predicated region
        $region45: #{tpu_custom_call.1} parent=35 // pred_check
          %p275 = pneg %p102
        $region46: #{tpu_custom_call.1} parent=35 // pred_check_branch
          %277 = sbr.rel (%p275) target = $region48
        $region47: #{tpu_custom_call.1} parent=35 // pred_region
          %278 = dma.done %s271, 128
        $region48: #{tpu_custom_call.1} parent=35 // pred_fallthru
          _
        %s279 = sand.u32 %s115, 1
        %s280 = scalar_lea.sflag [#allocation11], %s279
        %s281 = sand.u32 %s115, 1
        %s282 = smul.addr %s281, 8
        %s283 = scalar_lea.vmem [#allocation10], %s282
        // Predicated region
        $region49: #{tpu_custom_call.1} parent=35 // pred_check
          %p284 = pneg %p128
        $region50: #{tpu_custom_call.1} parent=35 // pred_check_branch
          %286 = sbr.rel (%p284) target = $region52
        $region51: #{tpu_custom_call.1} parent=35 // pred_region
          %287 = dma.done %s280, 128
        $region52: #{tpu_custom_call.1} parent=35 // pred_fallthru
          _
        %s288 = sand.u32 %s37, 1
        %s289 = scalar_lea.sflag [#allocation5], %s288
        %s290 = sand.u32 %s37, 1
        %s291 = smul.addr %s290, 8
        %s292 = scalar_lea.vmem [#allocation4], %s291
        %p293 = pneg %p50
        %p294 = pneg %p47
        %s295 = sand.u32 %s29, 1
        %s296 = scalar_lea.sflag [#allocation8], %s295
        %s297 = sand.u32 %s63, 1
        %s298 = smul.addr %s297, 8
        %s299 = scalar_lea.vmem [#allocation7], %s298
        %p300 = pneg %p76
        %p301 = pneg %p73
        %s302 = sand.u32 %s29, 1
        %s303 = scalar_lea.sflag [#allocation8], %s302
        %s304 = sand.u32 %s89, 1
        %s305 = smul.addr %s304, 8
        %s306 = scalar_lea.vmem [#allocation9], %s305
        %p307 = pneg %p102
        %p308 = pneg %p99
        %s309 = sand.u32 %s115, 1
        %s310 = scalar_lea.sflag [#allocation11], %s309
        %s311 = sand.u32 %s115, 1
        %s312 = smul.addr %s311, 8
        %s313 = scalar_lea.vmem [#allocation10], %s312
        %p314 = pneg %p128
        %p315 = pneg %p125
        %p316 = pneg %p154
        %p317 = pneg %p151
        %s318 = sand.u32 %s141, 1
        %s319 = scalar_lea.sflag [#allocation6], %s318
        %s320 = sand.u32 %s141, 1
        %s321 = smul.addr %s320, 8
        %s322 = scalar_lea.vmem [#allocation12], %s321
        %v323 = vld [vmem:[%s256] sm:$0xff]
        %v324 = vld [vmem:[%s265] sm:$0xff]
        %v325 = vld [vmem:[%s274] sm:$0xff]
        %v326 = vld [vmem:[%s283] sm:$0xff]
        %vm327 = vcmp.gt.f32.partialorder %v326, 0.0
        %v328 = vsub.f32 1.0, %v325
        %v329 = vsel %vm327, %v325, %v328
        %v330 = vlog2.pop %v329
        %v331 = vmul.f32 %v330, 0.6931472
        %v332 = vmax.f32 %v331, -100.0
        %v333 = vsub.f32 0.0, %v332
        %v334 = vsel %vm327, %v326, 1.0
        %v335 = vlog2.pop %v334
        %v336 = vmul.f32 %v335, 0.6931472
        %v337 = vrcp.pop %v324
        %v338 = vsub.f32 %v336, %v323
        %v339 = vmul.f32 %v338, %v337
        %v340 = vmul.f32 %v339, -0.5
        %v341 = vmul.f32 %v340, %v339
        %v342 = vsub.f32 %v341, %v336
        %v343 = vlog2.pop %v324
        %v344 = vmul.f32 %v343, 0.6931472
        %v345 = vsub.f32 %v342, %v344
        %v346 = vsub.f32 %v345, 0.9189385
        %v347 = vsub.f32 %v333, %v346
        %p348 = scmp.ne.s32.totalorder %s29, 1
        // Predicated region
        $region53: #{tpu_custom_call.1} parent=35 // pred_check
          %p349 = pneg %p348
        $region54: #{tpu_custom_call.1} parent=35 // pred_check_branch
          %351 = sbr.rel (%p349) target = $region56
        $region55: #{tpu_custom_call.1} parent=35 // pred_region
          %v352 = vadd.f32 %v347, 0.0
          %353 = vst [vmem:[%s322] sm:$0xff] %v352
        $region56: #{tpu_custom_call.1} parent=35 // pred_fallthru
          _
        %p354 = scmp.eq.s32.totalorder %s29, 1
        // Predicated region
        $region57: #{tpu_custom_call.1} parent=35 // pred_check
          %p355 = pneg %p354
        $region58: #{tpu_custom_call.1} parent=35 // pred_check_branch
          %357 = sbr.rel (%p355) target = $region60
        $region59: #{tpu_custom_call.1} parent=35 // pred_region
          %s358 = smul.u32 %s29, 8
          %v359 = vlaneseq
          %v360 = vshrl.u32 %v359, 7
          %v361 = vstv %s358
          %v362 = vadd.s32 %v361, %v360
          %s363 = sld [smem:[#allocation3]]
          %v364 = vstv %s363
          %vm365 = vcmp.lt.s32.totalorder %v362, %v364
          %v366 = vsel %vm365, %v347, 0.0
          %v367 = vadd.f32 %v366, 0.0
          %368 = vst [vmem:[%s322] sm:$0xff] %v367
        $region60: #{tpu_custom_call.1} parent=35 // pred_fallthru
          _
        %s369 = sand.u32 %s141, 1
        %s370 = scalar_lea.sflag [#allocation6], %s369
        %s371 = sand.u32 %s141, 1
        %s372 = smul.addr %s371, 8
        %s373 = scalar_lea.vmem [#allocation12], %s372
        // Predicated region
        $region61: #{tpu_custom_call.1} parent=35 // pred_check
          %p374 = pneg %p151
        $region62: #{tpu_custom_call.1} parent=35 // pred_check_branch
          %376 = sbr.rel (%p374) target = $region64
        $region63: #{tpu_custom_call.1} parent=35 // pred_region
          %s378 = ssub.s32 128, 128
          %379 = vsyncadd %s370, %s378
          %s380 = smul.addr %s29, 128
          %s381 = scalar_lea.hbm %s5, %s380
          %s383 = sshll.u32 %s373, 4
          %s384 = int_to_ptr.vmem [resolvable:$true] %s383
          %386 = dma.vmem_to_hbm [thread:$0]  %s384, 128, %s381, %s370
        $region64: #{tpu_custom_call.1} parent=35 // pred_fallthru
          _
      $region36: #{tpu_custom_call.1} parent=5 // pred_fallthru
        _
      %p387 = scmp.le.s32.totalorder 2, %s24
      // Predicated region
      $region65: #{tpu_custom_call.1} parent=5 // pred_check
        %p388 = pneg %p387
      $region66: #{tpu_custom_call.1} parent=5 // pred_check_branch
        %390 = sbr.rel (%p388) target = $region68
      $region67: #{tpu_custom_call.1} parent=5 // pred_region
        %s391 = ssub.s32 %s24, 2
        // Predicated region
        $region69: #{tpu_custom_call.1} parent=67 // pred_check
          %p392 = pneg %p157
        $region70: #{tpu_custom_call.1} parent=67 // pred_check_branch
          %394 = sbr.rel (%p392) target = $region72
        $region71: #{tpu_custom_call.1} parent=67 // pred_region
          %s395 = sand.u32 %s142, 1
          %s396 = scalar_lea.sflag [#allocation6], %s395
          %s397 = sand.u32 %s142, 1
          %s398 = smul.addr %s397, 8
          %s399 = scalar_lea.vmem [#allocation12], %s398
          %400 = dma.done %s396, 128
        $region72: #{tpu_custom_call.1} parent=67 // pred_fallthru
          _
      $region68: #{tpu_custom_call.1} parent=5 // pred_fallthru
        _
    $region6: #{tpu_custom_call.1} parent=1 // loop_footer
      %s28 = sadd.s32 1, %s24
    $region7: #{tpu_custom_call.1} parent=1 // loop_footer_branch
      %23 = sbr.rel target = $region3
    $region8: #{tpu_custom_call.1} parent=1 // loop_exit
      _
    %401 = vsyncpa [#allocation5], 1
    %s402 = scalar_lea.sflag [#allocation5], 1
    %403 = vsyncpa %s402, 1
    %404 = vsyncpa [#allocation8], 1
    %s405 = scalar_lea.sflag [#allocation8], 1
    %406 = vsyncpa %s405, 1
    %407 = vsyncpa [#allocation11], 1
    %s408 = scalar_lea.sflag [#allocation11], 1
    %409 = vsyncpa %s408, 1
    %410 = vsyncpa [#allocation6], 1
    %s411 = scalar_lea.sflag [#allocation6], 1
    %412 = vsyncpa %s411, 1

</llo_original>
